<compile_context>
chip_gen: v5e
topology: v5e:2x2
jax: 0.10.0
libtpu: 0.0.40
codegen_flags: <defaults>
</compile_context>

<pallas_src>
import functools

import jax
import jax.numpy as jnp
from jax import lax
from jax.experimental import pallas as pl
from jax.experimental.pallas import tpu as pltpu


def _get_quantized_range(bitwidth: int):
    return -(1 << (bitwidth - 1)), (1 << (bitwidth - 1)) - 1


def _round_up(a: int, b: int) -> int:
    return (a + b - 1) // b * b


def _default_use_int_dot() -> bool:
    """v5e/v6e MXUs have a native s8xs8->s32 path; v7x does not (fp8/bf16 only)."""
    try:
        kind = jax.devices()[0].device_kind.lower()
    except Exception:
        return True
    return "v7" not in kind


def _qlinear_kernel(x_ref, w_ref, b_ref, s_ref, o_ref, acc_ref, *,
                    output_zero_point, qmin, qmax, use_int_dot, acc_is_f32):
    k = pl.program_id(2)

    @pl.when(k == 0)
    def _():
        acc_ref[...] = jnp.zeros_like(acc_ref)

    if use_int_dot:
        # Native s8 x s8 -> s32 MXU path (v5e/v6e). Plain [tm,tk] x [tk,tn].
        acc_ref[...] += lax.dot_general(
            x_ref[...], w_ref[...],
            dimension_numbers=(((1,), (0,)), ((), ())),
            preferred_element_type=jnp.int32)
    else:
        # v7x: bf16 operands (exact for int8 range), f32 partial sum.
        # tk <= 1024 guarantees |partial| < 2^24 so f32 stays integer-exact.
        p = lax.dot_general(
            x_ref[...].astype(jnp.bfloat16), w_ref[...].astype(jnp.bfloat16),
            dimension_numbers=(((1,), (0,)), ((), ())),
            preferred_element_type=jnp.float32)
        if acc_is_f32:
            acc_ref[...] += p                    # whole-K exact in f32
        else:
            acc_ref[...] += p.astype(jnp.int32)  # fold into int32 accumulator

    @pl.when(k == pl.num_programs(2) - 1)
    def _():
        if acc_is_f32:
            acc = acc_ref[...] + b_ref[...].astype(jnp.float32)   # [tm, tn]
        else:
            acc = (acc_ref[...] + b_ref[...]).astype(jnp.float32)
        out = acc * s_ref[...] + output_zero_point                # folded scale
        out = jnp.clip(jnp.round(out), qmin, qmax)                # half-to-even
        o_ref[...] = out.astype(jnp.int8)


class QuantizedLinearPallas:
    """Pallas TPU analogue of QuantizedLinear: all static prep done at init."""

    def __init__(self, weight, bias, input_zero_point, output_zero_point,
                 input_scale, weight_scale, output_scale,
                 feature_bitwidth=8, weight_bitwidth=8,
                 tm=512, tn=512, tk=None, use_int_dot=None):
        weight = jnp.asarray(weight, jnp.int8)          # [M, K]
        M, K = weight.shape
        if bias is None:
            bias = jnp.zeros((M,), jnp.int32)
        bias = jnp.asarray(bias, jnp.int32)
        weight_scale = jnp.asarray(weight_scale, jnp.float32)

        self.M, self.K = M, K
        self.input_zero_point = int(input_zero_point)   # carried; unused in fwd
        self.output_zero_point = float(output_zero_point)
        self.feature_bitwidth = int(feature_bitwidth)
        del weight_bitwidth                             # unused in reference fwd
        self.qmin, self.qmax = _get_quantized_range(self.feature_bitwidth)

        self.use_int_dot = (_default_use_int_dot()
                            if use_int_dot is None else bool(use_int_dot))

        # ---- static tile selection ----
        self.tm_max = max(32, _round_up(int(tm), 32))
        Mp0 = _round_up(M, 128)
        tn = min(max(128, _round_up(int(tn), 128)), Mp0)
        if (not self.use_int_dot) and (Mp0 // tn < 2) and Mp0 >= 256:
            # v7x has 2 TensorCores: keep >= 2 parallel j-tiles when possible.
            tn = _round_up((Mp0 + 1) // 2, 128)
        self.tn = tn

        Kp0 = _round_up(K, 128)
        if tk is None:
            tk = min(Kp0, 2048 if self.use_int_dot else 1024)
        tk = min(max(128, _round_up(int(tk), 128)), Kp0)
        if not self.use_int_dot:
            # Exactness guard for the bf16/f32 fallback path.
            assert tk <= 1024, "bf16 fallback path requires tk <= 1024"
        self.tk = tk

        self.Kp = _round_up(K, self.tk)
        self.Mp = _round_up(M, self.tn)

        # f32 accumulator on the bf16 path is exact when total K <= 1024.
        self.acc_is_f32 = (not self.use_int_dot) and (K <= 1024)

        # ---- one-time weight / bias / scale prep (hoisted out of forward) ----
        w_t = weight.T                                               # [K, M]
        self.w_p = jnp.pad(w_t, ((0, self.Kp - K), (0, self.Mp - M)))
        self.b_p = jnp.pad(bias, (0, self.Mp - M)).reshape(1, self.Mp)
        # Same op order as the reference: in_s * w_s / out_s, all in f32.
        scale = (float(input_scale) * weight_scale) / float(output_scale)
        self.s_p = jnp.pad(scale, (0, self.Mp - M)).reshape(1, self.Mp)

        self._fns = {}   # cache of compiled callables keyed by (Np, tm)

    # -- build one pallas_call for a given padded batch / tm --
    def _build(self, Np, tm):
        tn, tk, Kp, Mp = self.tn, self.tk, self.Kp, self.Mp
        grid = (Np // tm, Mp // tn, Kp // tk)
        # Deep pipelining only where per-step compute is short (small tm) and
        # there is a K loop to overlap with.
        deep = (tm <= 64) and (grid[2] >= 2)

        def _spec(shape, index_map, buffered):
            if buffered:
                try:
                    return pl.BlockSpec(shape, index_map,
                                        pipeline_mode=pl.Buffered(3))
                except TypeError:   # older pallas without pipeline_mode kwarg
                    pass
            return pl.BlockSpec(shape, index_map)

        kernel = functools.partial(
            _qlinear_kernel,
            output_zero_point=self.output_zero_point,
            qmin=float(self.qmin), qmax=float(self.qmax),
            use_int_dot=self.use_int_dot, acc_is_f32=self.acc_is_f32)

        acc_dtype = jnp.float32 if self.acc_is_f32 else jnp.int32

        call = pl.pallas_call(
            kernel,
            out_shape=jax.ShapeDtypeStruct((Np, Mp), jnp.int8),
            grid_spec=pltpu.PrefetchScalarGridSpec(
                num_scalar_prefetch=0,
                grid=grid,
                in_specs=[
                    _spec((tm, tk), lambda i, j, k: (i, k), deep),   # x tile
                    _spec((tk, tn), lambda i, j, k: (k, j), deep),   # w.T tile
                    pl.BlockSpec((1, tn), lambda i, j, k: (0, j)),   # bias
                    pl.BlockSpec((1, tn), lambda i, j, k: (0, j)),   # scale
                ],
                out_specs=pl.BlockSpec((tm, tn), lambda i, j, k: (i, j)),
                scratch_shapes=[pltpu.VMEM((tm, tn), acc_dtype)],
            ),
            compiler_params=pltpu.CompilerParams(
                dimension_semantics=("parallel", "parallel", "arbitrary")),
            cost_estimate=pl.CostEstimate(
                flops=2 * Np * Mp * Kp,
                transcendentals=0,
                bytes_accessed=Np * Kp + Kp * Mp + Np * Mp + 8 * Mp),
        )
        return jax.jit(call)

    def __call__(self, x):
        N, K = x.shape
        assert K == self.K and x.dtype == jnp.int8
        tm = min(self.tm_max, _round_up(N, 32))
        Np = _round_up(N, tm)
        key = (Np, tm)
        if key not in self._fns:
            self._fns[key] = self._build(Np, tm)
        if (Np, self.Kp) != (N, K):
            x = jnp.pad(x, ((0, Np - N), (0, self.Kp - K)))
        out = self._fns[key](x, self.w_p, self.b_p, self.s_p)
        return out[:N, :self.M]


# ----------------------------- testing -----------------------------

def _reference(x, weight, bias, weight_scale, *, output_zero_point,
               input_scale, output_scale, feature_bitwidth):
    # Pure-JAX reference mirroring the torch CPU path (int32-exact matmul).
    acc = jnp.dot(x.astype(jnp.int32), weight.astype(jnp.int32).T)
    if bias is not None:
        acc = acc + bias.astype(jnp.int32)
    out = acc.astype(jnp.float32) * (input_scale * weight_scale / output_scale).reshape(1, -1)
    out = out + output_zero_point
    qmin, qmax = _get_quantized_range(feature_bitwidth)
    return jnp.clip(jnp.round(out), qmin, qmax).astype(jnp.int8)


def _run_case(key, N, K, M, **module_kwargs):
    k1, k2, k3, k4 = jax.random.split(key, 4)
    x = jax.random.randint(k1, (N, K), -128, 128, dtype=jnp.int32).astype(jnp.int8)
    weight = jax.random.randint(k2, (M, K), -128, 128, dtype=jnp.int32).astype(jnp.int8)
    bias = jax.random.randint(k3, (M,), -512, 512, dtype=jnp.int32)
    weight_scale = jax.random.uniform(k4, (M,), jnp.float32, 0.005, 0.02)

    input_zero_point = 3
    output_zero_point = -5
    input_scale = 0.0123
    output_scale = 0.045
    feature_bitwidth = 8

    layer = QuantizedLinearPallas(
        weight, bias,
        input_zero_point=input_zero_point,
        output_zero_point=output_zero_point,
        input_scale=input_scale,
        weight_scale=weight_scale,
        output_scale=output_scale,
        feature_bitwidth=feature_bitwidth,
        weight_bitwidth=8,
        **module_kwargs,
    )
    out = jax.block_until_ready(layer(x))

    ref = _reference(
        x, weight, bias, weight_scale,
        output_zero_point=output_zero_point,
        input_scale=input_scale,
        output_scale=output_scale,
        feature_bitwidth=feature_bitwidth,
    )
    assert out.shape == (N, M) and out.dtype == jnp.int8
    assert bool(jnp.all(out == ref)), f"Pallas mismatch vs reference at N={N},K={K},M={M}"


if __name__ == "__main__":
    key = jax.random.PRNGKey(0)
    kA, kB, kC = jax.random.split(key, 3)

    # Toy shape matching the module's typical MLP usage (exercises padding).
    _run_case(kA, N=8, K=32, M=16)

    # Multi-tile grid with forced small tiles: K-axis accumulator
    # init/finalize path and the deep-pipelined small-tm regime.
    _run_case(kB, N=48, K=384, M=192, tn=128, tk=128)

    # Default tile picks on a slightly larger layer.
    _run_case(kC, N=64, K=512, M=256)

    print("KERNEL_OK")
</pallas_src>

<mosaic_0001>
module attributes {stable_mosaic.version = 11 : i64} {
  func.func @_qlinear_kernel(%arg0: i32, %arg1: i32, %arg2: i32, %arg3: memref<32x128xi8, #tpu.memory_space<vmem>>, %arg4: memref<128x128xi8, #tpu.memory_space<vmem>>, %arg5: memref<1x128xi32, #tpu.memory_space<vmem>>, %arg6: memref<1x128xf32, #tpu.memory_space<vmem>>, %arg7: memref<32x128xi8, #tpu.memory_space<vmem>>, %arg8: memref<32x128xi32, #tpu.memory_space<vmem>>) attributes {dimension_semantics = [#tpu.dimension_semantics<parallel>, #tpu.dimension_semantics<parallel>, #tpu.dimension_semantics<arbitrary>], iteration_bounds = array<i64: 1, 1, 1>, scalar_prefetch = 0 : i64, scratch_operands = 1 : i64, tpu.core_type = #tpu.core_type<tc>, window_params = [{transform_indices = @transform_0, window_bounds = array<i64: 32, 128>}, {transform_indices = @transform_1, window_bounds = array<i64: 128, 128>}, {transform_indices = @transform_2, window_bounds = array<i64: 1, 128>}, {transform_indices = @transform_3, window_bounds = array<i64: 1, 128>}, {transform_indices = @transform_4, window_bounds = array<i64: 32, 128>}]} {
    %c0_i32 = arith.constant 0 : i32
    %0 = arith.cmpi eq, %arg2, %c0_i32 : i32
    %1 = arith.extui %0 : i1 to i32
    %c0_i32_0 = arith.constant 0 : i32
    %2 = arith.cmpi ne, %1, %c0_i32_0 : i32
    scf.if %2 {
      %c0_i32_10 = arith.constant 0 : i32
      %12 = vector.broadcast %c0_i32_10 : i32 to vector<32x128xi32>
      %c0_11 = arith.constant 0 : index
      %c0_12 = arith.constant 0 : index
      %13 = vector.load %arg8[%c0_11, %c0_12] : memref<32x128xi32, #tpu.memory_space<vmem>>, vector<32x128xi32>
      tpu.vector_store %arg8[%c0_11, %c0_12], %12 {strides = array<i32>} : memref<32x128xi32, #tpu.memory_space<vmem>>, vector<32x128xi32>,
    } else {
    }
    %c0 = arith.constant 0 : index
    %c0_1 = arith.constant 0 : index
    %3 = vector.load %arg8[%c0, %c0_1] : memref<32x128xi32, #tpu.memory_space<vmem>>, vector<32x128xi32>
    %c0_2 = arith.constant 0 : index
    %c0_3 = arith.constant 0 : index
    %4 = vector.load %arg3[%c0_2, %c0_3] : memref<32x128xi8, #tpu.memory_space<vmem>>, vector<32x128xi8>
    %c0_4 = arith.constant 0 : index
    %c0_5 = arith.constant 0 : index
    %5 = vector.load %arg4[%c0_4, %c0_5] : memref<128x128xi8, #tpu.memory_space<vmem>>, vector<128x128xi8>
    %cst = arith.constant dense<0> : vector<32x128xi32>
    %6 = tpu.matmul %4, %5, %cst {dimension_numbers = #tpu.dot_dimension_numbers<[1], [0], [0], [1], [0, 0, 1, 1], [], []>} : vector<32x128xi8>, vector<128x128xi8>, vector<32x128xi32> -> vector<32x128xi32>
    %7 = arith.addi %3, %6 : vector<32x128xi32>
    %c0_6 = arith.constant 0 : index
    %c0_7 = arith.constant 0 : index
    %8 = vector.load %arg8[%c0_6, %c0_7] : memref<32x128xi32, #tpu.memory_space<vmem>>, vector<32x128xi32>
    tpu.vector_store %arg8[%c0_6, %c0_7], %7 {strides = array<i32>} : memref<32x128xi32, #tpu.memory_space<vmem>>, vector<32x128xi32>,
    %c0_i32_8 = arith.constant 0 : i32
    %9 = arith.cmpi eq, %arg2, %c0_i32_8 : i32
    %10 = arith.extui %9 : i1 to i32
    %c0_i32_9 = arith.constant 0 : i32
    %11 = arith.cmpi ne, %10, %c0_i32_9 : i32
    scf.if %11 {
      %c0_10 = arith.constant 0 : index
      %c0_11 = arith.constant 0 : index
      %12 = vector.load %arg8[%c0_10, %c0_11] : memref<32x128xi32, #tpu.memory_space<vmem>>, vector<32x128xi32>
      %c0_12 = arith.constant 0 : index
      %c0_13 = arith.constant 0 : index
      %13 = vector.load %arg5[%c0_12, %c0_13] : memref<1x128xi32, #tpu.memory_space<vmem>>, vector<1x128xi32>
      %14 = vector.broadcast %13 : vector<1x128xi32> to vector<32x128xi32>
      %15 = arith.addi %12, %14 : vector<32x128xi32>
      %16 = arith.sitofp %15 : vector<32x128xi32> to vector<32x128xf32>
      %c0_14 = arith.constant 0 : index
      %c0_15 = arith.constant 0 : index
      %17 = vector.load %arg6[%c0_14, %c0_15] : memref<1x128xf32, #tpu.memory_space<vmem>>, vector<1x128xf32>
      %18 = vector.broadcast %17 : vector<1x128xf32> to vector<32x128xf32>
      %19 = arith.mulf %16, %18 : vector<32x128xf32>
      %cst_16 = arith.constant -5.000000e+00 : f32
      %20 = vector.broadcast %cst_16 : f32 to vector<32x128xf32>
      %21 = arith.addf %19, %20 : vector<32x128xf32>
      %22 = math.roundeven %21 : vector<32x128xf32>
      %cst_17 = arith.constant -1.280000e+02 : f32
      %cst_18 = arith.constant 1.270000e+02 : f32
      %23 = vector.broadcast %cst_17 : f32 to vector<32x128xf32>
      %24 = arith.maximumf %23, %22 : vector<32x128xf32>
      %25 = vector.broadcast %cst_18 : f32 to vector<32x128xf32>
      %26 = arith.minimumf %25, %24 : vector<32x128xf32>
      %27 = arith.fptosi %26 : vector<32x128xf32> to vector<32x128xi8>
      %c0_19 = arith.constant 0 : index
      %c0_20 = arith.constant 0 : index
      %28 = vector.load %arg7[%c0_19, %c0_20] : memref<32x128xi8, #tpu.memory_space<vmem>>, vector<32x128xi8>
      tpu.vector_store %arg7[%c0_19, %c0_20], %27 {strides = array<i32>} : memref<32x128xi8, #tpu.memory_space<vmem>>, vector<32x128xi8>,
    } else {
    }
    return
  }
  func.func @transform_0(%arg0: i32, %arg1: i32, %arg2: i32) -> (i32, i32) {
    %c0_i32 = arith.constant 0 : i32
    return %arg0, %arg2 : i32, i32
  }
  func.func @transform_1(%arg0: i32, %arg1: i32, %arg2: i32) -> (i32, i32) {
    %c0_i32 = arith.constant 0 : i32
    return %arg2, %arg1 : i32, i32
  }
  func.func @transform_2(%arg0: i32, %arg1: i32, %arg2: i32) -> (i32, i32) {
    %c0_i32 = arith.constant 0 : i32
    %c0_i32_0 = arith.constant 0 : i32
    return %c0_i32, %arg1 : i32, i32
  }
  func.func @transform_3(%arg0: i32, %arg1: i32, %arg2: i32) -> (i32, i32) {
    %c0_i32 = arith.constant 0 : i32
    %c0_i32_0 = arith.constant 0 : i32
    return %c0_i32, %arg1 : i32, i32
  }
  func.func @transform_4(%arg0: i32, %arg1: i32, %arg2: i32) -> (i32, i32) {
    %c0_i32 = arith.constant 0 : i32
    return %arg0, %arg1 : i32, i32
  }
}

</mosaic_0001>

<llo_original>
// kernel: tpu_custom_call.1
$region0: #{tpu_custom_call.1}
  #allocation0 [shape = 'u32[]', space=smem, size = 0x4, offset = 0x4, fixed_abs, tag = 'smem constant byte address 0x4 - core index']
  #allocation1 [shape = 'u32[72,128]{1,0:T(1,128)}', space=vmem, size = 0x9000, scoped, tag = 'internal scratch']
  #allocation2 [shape = 's32[32,128]{1,0:T(8,128)}', space=vmem, size = 0x4000, scoped, tag = 'scratch operand']
  %s0 = inlined_call_operand.hbm [shape: s8[32,128], index: 0, kind: input, shape index: {}]
  %s1 = inlined_call_operand.hbm [shape: s8[128,128], index: 1, kind: input, shape index: {}]
  %s2 = inlined_call_operand.vmem [shape: s32[1,128], index: 2, kind: input, shape index: {}]
  %s3 = inlined_call_operand.vmem [shape: f32[1,128], index: 3, kind: input, shape index: {}]
  %s4 = inlined_call_operand.hbm [shape: s8[32,128], index: 4, kind: output, shape index: {}]
  %s5 = sld [smem:[#allocation0]]
  $region42: #{tpu_custom_call.1} parent=0
    _
  %s7 = ssub.s32 1, %s5
  %s8 = scalar_select 0, %s7, %s5
  $region1: #{tpu_custom_call.1} parent=0
    #allocation3 [shape = 'u8[4096]{0}', space=vmem, size = 0x1000, scoped, tag = 'input window, operand 0, single buffered']
    #allocation4 [shape = 's32[1]{0}', space=sflag, size = 0x4, scoped, tag = 'scoped memory for tpu_custom_call.1']
    #allocation5 [shape = 's32[1]{0}', space=sflag, size = 0x4, scoped, tag = 'scoped memory for tpu_custom_call.1']
    #allocation6 [shape = 'u8[16384]{0}', space=vmem, size = 0x4000, scoped, tag = 'input window, operand 1, single buffered']
    #allocation7 [shape = 's32[1]{0}', space=sflag, size = 0x4, scoped, tag = 'scoped memory for tpu_custom_call.1']
    #allocation8 [shape = 'u8[4096]{0}', space=vmem, size = 0x1000, scoped, tag = 'output window, operand 0, single buffered']
    %9 = vsyncpa [#allocation4], 0
    %10 = vsyncpa [#allocation7], 0
    %11 = vsyncpa [#allocation5], 0
    // Predicated region
    $region2: #{tpu_custom_call.1} parent=1 // pred_check
      _
    $region3: #{tpu_custom_call.1} parent=1 // pred_check_branch
      %13 = sbr.rel (0) target = $region5
    $region4: #{tpu_custom_call.1} parent=1 // pred_region
      %15 = vsyncadd [#allocation4], 0
      %s17 = sshll.u32 %s0, 4
      %s18 = int_to_ptr.hbm [resolvable:$true] %s17
      %s19 = sshll.u32 [#allocation3], 4
      %s20 = int_to_ptr.vmem [resolvable:$true] %s19
      %22 = dma.hbm_to_vmem [thread:$0]  %s18, 128, %s20, [#allocation4]
    $region5: #{tpu_custom_call.1} parent=1 // pred_fallthru
      _
    // Predicated region
    $region6: #{tpu_custom_call.1} parent=1 // pred_check
      _
    $region7: #{tpu_custom_call.1} parent=1 // pred_check_branch
      %24 = sbr.rel (0) target = $region9
    $region8: #{tpu_custom_call.1} parent=1 // pred_region
      %26 = vsyncadd [#allocation7], 0
      %s27 = sshll.u32 %s1, 4
      %s28 = int_to_ptr.hbm [resolvable:$true] %s27
      %s29 = sshll.u32 [#allocation6], 4
      %s30 = int_to_ptr.vmem [resolvable:$true] %s29
      %35 = dma.hbm_to_vmem [thread:$0]  %s28, 512, %s30, [#allocation7], 128, 128, 8
    $region9: #{tpu_custom_call.1} parent=1 // pred_fallthru
      _
    // Predicated region
    $region10: #{tpu_custom_call.1} parent=1 // pred_check
      _
    $region11: #{tpu_custom_call.1} parent=1 // pred_check_branch
      %37 = sbr.rel (0) target = $region13
    $region12: #{tpu_custom_call.1} parent=1 // pred_region
      _
    $region13: #{tpu_custom_call.1} parent=1 // pred_fallthru
      _
    // Predicated region
    $region14: #{tpu_custom_call.1} parent=1 // pred_check
      _
    $region15: #{tpu_custom_call.1} parent=1 // pred_check_branch
      %39 = sbr.rel (0) target = $region17
    $region16: #{tpu_custom_call.1} parent=1 // pred_region
      _
    $region17: #{tpu_custom_call.1} parent=1 // pred_fallthru
      _
    // Predicated region
    $region18: #{tpu_custom_call.1} parent=1 // pred_check
      _
    $region19: #{tpu_custom_call.1} parent=1 // pred_check_branch
      %41 = sbr.rel (0) target = $region21
    $region20: #{tpu_custom_call.1} parent=1 // pred_region
      %43 = dma.done [#allocation4], 128
    $region21: #{tpu_custom_call.1} parent=1 // pred_fallthru
      _
    // Predicated region
    $region22: #{tpu_custom_call.1} parent=1 // pred_check
      _
    $region23: #{tpu_custom_call.1} parent=1 // pred_check_branch
      %45 = sbr.rel (0) target = $region25
    $region24: #{tpu_custom_call.1} parent=1 // pred_region
      %47 = dma.done [#allocation7], 512
    $region25: #{tpu_custom_call.1} parent=1 // pred_fallthru
      _
    %p48 = scmp.eq.s32.totalorder 0, 0
    // Predicated region
    $region26: #{tpu_custom_call.1} parent=1 // pred_check
      %p49 = pneg %p48
    $region27: #{tpu_custom_call.1} parent=1 // pred_check_branch
      %51 = sbr.rel (%p49) target = $region29
    $region28: #{tpu_custom_call.1} parent=1 // pred_region
      %52 = vst [vmem:[#allocation2] sm:$0xff] 0
      %53 = vst [vmem:[#allocation2 + $0x8] sm:$0xff] 0
      %54 = vst [vmem:[#allocation2 + $0x10] sm:$0xff] 0
      %55 = vst [vmem:[#allocation2 + $0x18] sm:$0xff] 0
    $region29: #{tpu_custom_call.1} parent=1 // pred_fallthru
      _
    %v56 = vld [vmem:[#allocation2] sm:$0xff]
    %v57 = vld [vmem:[#allocation2 + $0x8] sm:$0xff]
    %v58 = vld [vmem:[#allocation2 + $0x10] sm:$0xff]
    %v59 = vld [vmem:[#allocation2 + $0x18] sm:$0xff]
    %v60 = vld [vmem:[#allocation3] sm:$0xff]
    %v61 = vld [vmem:[#allocation6] sm:$0xff]
    %v62 = vld [vmem:[#allocation6 + $0x8] sm:$0xff]
    %v63 = vld [vmem:[#allocation6 + $0x10] sm:$0xff]
    %v64 = vld [vmem:[#allocation6 + $0x18] sm:$0xff]
    %65 = vmatpush.s8.msra.mxu0 %v64
    %66 = vmatpush.s8.msra.mxu0 %v63
    %67 = vmatpush.s8.msra.mxu0 %v62
    %68 = vmatpush.s8.msra.mxu0 %v61
    %69 = vmatmul.s8.gmra.mxu0 %v60
    %v70 = vpop.s32.mrf.mxu0
    %v71 = vadd.s32 0, %v70
    %v72 = vpop.s32.mrf.mxu0
    %v73 = vadd.s32 0, %v72
    %v74 = vpop.s32.mrf.mxu0
    %v75 = vadd.s32 0, %v74
    %v76 = vpop.s32.mrf.mxu0
    %v77 = vadd.s32 0, %v76
    %78 = vdwg.mxu0
    %v79 = vadd.s32 %v56, %v71
    %v80 = vadd.s32 %v57, %v73
    %v81 = vadd.s32 %v58, %v75
    %v82 = vadd.s32 %v59, %v77
    %83 = vst [vmem:[#allocation2] sm:$0xff] %v79
    %84 = vst [vmem:[#allocation2 + $0x8] sm:$0xff] %v80
    %85 = vst [vmem:[#allocation2 + $0x10] sm:$0xff] %v81
    %86 = vst [vmem:[#allocation2 + $0x18] sm:$0xff] %v82
    // Predicated region
    $region30: #{tpu_custom_call.1} parent=1 // pred_check
      %p87 = pneg %p48
    $region31: #{tpu_custom_call.1} parent=1 // pred_check_branch
      %89 = sbr.rel (%p87) target = $region33
    $region32: #{tpu_custom_call.1} parent=1 // pred_region
      %v90 = vld [vmem:[#allocation2] sm:$0xff]
      %v91 = vld [vmem:[#allocation2 + $0x8] sm:$0xff]
      %v92 = vld [vmem:[#allocation2 + $0x10] sm:$0xff]
      %v93 = vld [vmem:[#allocation2 + $0x18] sm:$0xff]
      %v94 = vld [vmem:[%s2] sm:$0x1]
      %v95 = vperm.slane %v94, 0
      %v96 = vadd.s32 %v90, %v95
      %v97 = vadd.s32 %v91, %v95
      %v98 = vadd.s32 %v92, %v95
      %v99 = vadd.s32 %v93, %v95
      %v100 = vcvt.s32.f32 %v96
      %v101 = vcvt.s32.f32 %v97
      %v102 = vcvt.s32.f32 %v98
      %v103 = vcvt.s32.f32 %v99
      %v104 = vld [vmem:[%s3] sm:$0x1]
      %v106 = vperm.slane %v104, 0
      %v108 = vmul.f32 %v100, %v106
      %v109 = vmul.f32 %v101, %v106
      %v110 = vmul.f32 %v102, %v106
      %v111 = vmul.f32 %v103, %v106
      %v112 = vadd.f32 %v108, -5.0
      %v113 = vadd.f32 %v109, -5.0
      %v114 = vadd.f32 %v110, -5.0
      %v115 = vadd.f32 %v111, -5.0
      %v116 = vround.ne.pseudo %v112
      %v117 = vround.ne.pseudo %v113
      %v118 = vround.ne.pseudo %v114
      %v119 = vround.ne.pseudo %v115
      %v120 = vmax.f32 %v116, -128.0
      %v121 = vmax.f32 %v117, -128.0
      %v122 = vmax.f32 %v118, -128.0
      %v123 = vmax.f32 %v119, -128.0
      %v124 = vmin.f32 %v120, 127.0
      %v125 = vmin.f32 %v121, 127.0
      %v126 = vmin.f32 %v122, 127.0
      %v127 = vmin.f32 %v123, 127.0
      %v128 = vmax.f32 %v124, -128.0
      %v129 = vmax.f32 %v125, -128.0
      %v130 = vmax.f32 %v126, -128.0
      %v131 = vmax.f32 %v127, -128.0
      %v132 = vmin.f32 %v128, 127.0
      %v133 = vmin.f32 %v129, 127.0
      %v134 = vmin.f32 %v130, 127.0
      %v135 = vmin.f32 %v131, 127.0
      %v136 = vcvt.f32.s32.to.zero.pseudo %v132
      %v137 = vcvt.f32.s32.to.zero.pseudo %v133
      %v138 = vcvt.f32.s32.to.zero.pseudo %v134
      %v139 = vcvt.f32.s32.to.zero.pseudo %v135
      %v140 = vpack.c.b16 %v137, %v136
      %v141 = vpack.c.b16 %v139, %v138
      %v142 = vpack.c.b8 %v141, %v140
      %143 = vst [vmem:[#allocation8] sm:$0xff] %v142
    $region33: #{tpu_custom_call.1} parent=1 // pred_fallthru
      _
    // Predicated region
    $region34: #{tpu_custom_call.1} parent=1 // pred_check
      _
    $region35: #{tpu_custom_call.1} parent=1 // pred_check_branch
      %145 = sbr.rel (0) target = $region37
    $region36: #{tpu_custom_call.1} parent=1 // pred_region
      %147 = vsyncadd [#allocation5], 0
      %s149 = sshll.u32 [#allocation8], 4
      %s150 = int_to_ptr.vmem [resolvable:$true] %s149
      %s151 = sshll.u32 %s4, 4
      %s152 = int_to_ptr.hbm [resolvable:$true] %s151
      %154 = dma.vmem_to_hbm [thread:$0]  %s150, 128, %s152, [#allocation5]
    $region37: #{tpu_custom_call.1} parent=1 // pred_fallthru
      _
    // Predicated region
    $region38: #{tpu_custom_call.1} parent=1 // pred_check
      _
    $region39: #{tpu_custom_call.1} parent=1 // pred_check_branch
      %156 = sbr.rel (0) target = $region41
    $region40: #{tpu_custom_call.1} parent=1 // pred_region
      %158 = dma.done [#allocation5], 128
    $region41: #{tpu_custom_call.1} parent=1 // pred_fallthru
      _
    %159 = vsyncpa [#allocation4], 1
    %160 = vsyncpa [#allocation7], 1
    %161 = vsyncpa [#allocation5], 1

</llo_original>
